<compile_context>
chip_gen: v7x
topology: tpu7x:2x2x1
jax: 0.10.0
libtpu: 0.0.40
codegen_flags: <defaults>
</compile_context>

<pallas_src>
import math
from functools import lru_cache, partial

import jax
import jax.numpy as jnp
from jax.experimental import pallas as pl
from jax.experimental.pallas import tpu as pltpu


# ------------------------------------------------------------------ utilities

def _round_up(n: int, m: int) -> int:
    return ((n + m - 1) // m) * m


def _pick_tile(dim: int, candidates) -> int:
    """Largest candidate tile that evenly divides `dim` (or `dim` if small)."""
    if dim <= candidates[0]:
        return dim
    for c in candidates:
        if dim % c == 0:
            return c
    return dim


@lru_cache(maxsize=1)
def _vmem_caps():
    """(fused-path byte budget, vmem_limit_bytes) derived from the chip."""
    cap = 64 * 1024 * 1024  # conservative fallback (v7x per-TC VMEM)
    try:
        cap = int(pltpu.get_tpu_info().vmem_capacity_bytes)
    except Exception:
        pass
    budget = int(cap * 0.70)   # room for Mosaic scratch / double buffers
    limit = int(cap * 0.85)    # never request the full physical VMEM
    return budget, limit


# ------------------------------------------------------- fused whole-MLP path

def _fused_mlp_kernel(*refs, depth: int):
    # refs layout: x, W0, b0, W1, b1, ..., W_{d-1}, b_{d-1}, out
    x_ref = refs[0]
    o_ref = refs[-1]
    wb = refs[1:-1]
    compute_dtype = x_ref.dtype

    a = x_ref[...]
    for i in range(depth):                       # static Python unroll
        w = wb[2 * i][...]                       # resident weight tile
        b = wb[2 * i + 1][...]                   # (1, Dout_pad) f32 bias
        a = jnp.dot(a, w, preferred_element_type=jnp.float32) + b
        if i < depth - 1:
            a = jnp.maximum(a, 0.0).astype(compute_dtype)
    o_ref[...] = a.astype(o_ref.dtype)


def _fused_forward(x_p, Ws, bs, depth, TB, B_pad, dpad, vmem_limit):
    dsize = jnp.dtype(x_p.dtype).itemsize
    flops = sum(2 * B_pad * dpad[i] * dpad[i + 1] for i in range(depth))
    bytes_accessed = int(
        dsize * (x_p.size + sum(int(w.size) for w in Ws))
        + 4 * (sum(int(b.size) for b in bs) + B_pad * dpad[-1])
    )

    inputs = [x_p]
    in_specs = [pl.BlockSpec((TB, dpad[0]), lambda i: (i, 0))]
    for l in range(depth):
        inputs += [Ws[l], bs[l]]
        in_specs += [
            pl.BlockSpec((dpad[l], dpad[l + 1]), lambda i: (0, 0)),  # resident
            pl.BlockSpec((1, dpad[l + 1]), lambda i: (0, 0)),        # resident
        ]

    return pl.pallas_call(
        partial(_fused_mlp_kernel, depth=depth),
        out_shape=jax.ShapeDtypeStruct((B_pad, dpad[-1]), jnp.float32),
        grid=(B_pad // TB,),
        in_specs=in_specs,
        out_specs=pl.BlockSpec((TB, dpad[-1]), lambda i: (i, 0)),
        compiler_params=pltpu.CompilerParams(
            dimension_semantics=("parallel",),      # megacore on v7x
            vmem_limit_bytes=vmem_limit,
        ),
        cost_estimate=pl.CostEstimate(
            flops=flops, transcendentals=0, bytes_accessed=bytes_accessed
        ),
    )(*inputs)


# ----------------------------------------------- tiled per-layer fallback path

def _tiled_linear_acc_kernel(x_ref, w_ref, b_ref, o_ref, acc_ref, *, apply_relu):
    k = pl.program_id(2)

    @pl.when(k == 0)
    def _():
        acc_ref[...] = jnp.zeros_like(acc_ref)

    acc_ref[...] += jnp.dot(
        x_ref[...], w_ref[...], preferred_element_type=jnp.float32
    )

    @pl.when(k == pl.num_programs(2) - 1)
    def _():
        r = acc_ref[...] + b_ref[...]            # (1, tn) broadcasts over rows
        if apply_relu:
            r = jnp.maximum(r, 0.0)
        o_ref[...] = r.astype(o_ref.dtype)


def _tiled_linear_1k_kernel(x_ref, w_ref, b_ref, o_ref, *, apply_relu):
    # Single K step: no accumulator scratch round trip.
    r = jnp.dot(x_ref[...], w_ref[...], preferred_element_type=jnp.float32)
    r = r + b_ref[...]
    if apply_relu:
        r = jnp.maximum(r, 0.0)
    o_ref[...] = r.astype(o_ref.dtype)


def _tiled_linear(x, w, b, *, apply_relu: bool, out_dtype):
    M, K = x.shape
    _, N = w.shape
    # M is guaranteed (by ann_forward) to be <=256 or a multiple of 256,
    # so tm is never a degenerate 8-row tile for large batches.
    tm = _pick_tile(M, (256, 128, 64, 32, 16, 8))
    tn = _pick_tile(N, (512, 256, 128))
    tk = _pick_tile(K, (512, 256, 128))

    if K == tk:
        return pl.pallas_call(
            partial(_tiled_linear_1k_kernel, apply_relu=apply_relu),
            out_shape=jax.ShapeDtypeStruct((M, N), out_dtype),
            grid=(M // tm, N // tn),
            in_specs=[
                pl.BlockSpec((tm, K), lambda i, j: (i, 0)),
                pl.BlockSpec((K, tn), lambda i, j: (0, j)),
                pl.BlockSpec((1, tn), lambda i, j: (0, j)),
            ],
            out_specs=pl.BlockSpec((tm, tn), lambda i, j: (i, j)),
            compiler_params=pltpu.CompilerParams(
                dimension_semantics=("parallel", "parallel")
            ),
        )(x, w, b)

    return pl.pallas_call(
        partial(_tiled_linear_acc_kernel, apply_relu=apply_relu),
        out_shape=jax.ShapeDtypeStruct((M, N), out_dtype),
        grid=(M // tm, N // tn, K // tk),
        in_specs=[
            pl.BlockSpec((tm, tk), lambda i, j, k: (i, k)),
            pl.BlockSpec((tk, tn), lambda i, j, k: (k, j)),
            pl.BlockSpec((1, tn), lambda i, j, k: (0, j)),
        ],
        out_specs=pl.BlockSpec((tm, tn), lambda i, j, k: (i, j)),
        scratch_shapes=[pltpu.VMEM((tm, tn), jnp.float32)],
        compiler_params=pltpu.CompilerParams(
            dimension_semantics=("parallel", "parallel", "arbitrary")
        ),
    )(x, w, b)


# -------------------------------------------------------------- model wrapper

def init_ann_params(key, dimensions):
    """Deterministic init mirroring ANN.init_weights: U(-1/sqrt(d_out), +)."""
    params = {}
    depth = len(dimensions) - 1
    for i in range(depth):
        d_in, d_out = dimensions[i], dimensions[i + 1]
        key, kw, kb = jax.random.split(key, 3)
        stdv = 1.0 / math.sqrt(d_out)
        params[f"W{i}"] = jax.random.uniform(
            kw, (d_in, d_out), jnp.float32, minval=-stdv, maxval=stdv
        )
        params[f"b{i}"] = jax.random.uniform(
            kb, (d_out,), jnp.float32, minval=-stdv, maxval=stdv
        )
    return params


def pad_ann_params(params, dimensions, compute_dtype=jnp.float32):
    """Zero-pad weights/biases ONCE to lane-aligned shapes (exact padding)."""
    dims = tuple(int(d) for d in dimensions)
    depth = len(dims) - 1
    dpad = [_round_up(d, 128) for d in dims]
    padded = {}
    for i in range(depth):
        W = params[f"W{i}"].astype(compute_dtype)
        b = params[f"b{i}"].astype(jnp.float32)  # bias added in f32 accumulator
        padded[f"W{i}"] = (
            jnp.zeros((dpad[i], dpad[i + 1]), compute_dtype)
            .at[: dims[i], : dims[i + 1]].set(W)
        )
        padded[f"b{i}"] = (
            jnp.zeros((1, dpad[i + 1]), jnp.float32).at[0, : dims[i + 1]].set(b)
        )
    return padded


def ann_forward(padded_params, x, dimensions, *, compute_dtype=jnp.float32,
                force_tiled: bool = False):
    dims = tuple(int(d) for d in dimensions)
    depth = len(dims) - 1
    B, d0 = x.shape
    assert d0 == dims[0]

    dpad = [_round_up(d, 128) for d in dims]
    # Batch tile: whole (8-aligned) batch if small, else 256-row tiles.
    TB = min(256, _round_up(B, 8))
    B_pad = _round_up(B, TB)

    dsize = jnp.dtype(compute_dtype).itemsize
    x_p = jnp.zeros((B_pad, dpad[0]), compute_dtype).at[:B, :d0].set(
        x.astype(compute_dtype)
    )

    Ws = [padded_params[f"W{i}"] for i in range(depth)]
    bs = [padded_params[f"b{i}"] for i in range(depth)]
    for i in range(depth):
        assert Ws[i].shape == (dpad[i], dpad[i + 1]) and Ws[i].dtype == compute_dtype
        assert bs[i].shape == (1, dpad[i + 1])

    # Fused-path footprint: resident weights (x2 for buffer safety) + one
    # double-buffered batch tile of x / out + f32 activation temporaries.
    weight_bytes = sum(int(w.size) * dsize for w in Ws) + sum(
        int(b.size) * 4 for b in bs
    )
    tile_bytes = (
        2 * TB * dpad[0] * dsize
        + 2 * TB * dpad[-1] * 4
        + 2 * TB * max(dpad) * 4
    )
    budget, vmem_limit = _vmem_caps()

    if (not force_tiled) and (2 * weight_bytes + tile_bytes) <= budget:
        out_p = _fused_forward(x_p, Ws, bs, depth, TB, B_pad, dpad, vmem_limit)
    else:
        a = x_p
        for i in range(depth):
            last = i == depth - 1
            a = _tiled_linear(
                a, Ws[i], bs[i],
                apply_relu=not last,
                out_dtype=jnp.float32 if last else compute_dtype,
            )
        out_p = a

    return out_p[:B, : dims[-1]].astype(jnp.float32)


def ann_forward_ref(params, x, dimensions):
    """Pure-JAX reference for correctness check (unpadded params)."""
    depth = len(dimensions) - 1
    a = x
    for i in range(depth - 1):
        a = jnp.maximum(a @ params[f"W{i}"] + params[f"b{i}"], 0.0)
    i = depth - 1
    return a @ params[f"W{i}"] + params[f"b{i}"]


# ---------------------------------------------------------------------- main

if __name__ == "__main__":
    dimensions = (32, 64, 48, 16)   # depth = 3 (two hidden relu layers + output)
    batch = 8

    key = jax.random.PRNGKey(0)
    key, kx = jax.random.split(key)
    x = jax.random.normal(kx, (batch, dimensions[0]), jnp.float32)
    params = init_ann_params(key, dimensions)
    ref = ann_forward_ref(params, x, dimensions)

    # Weights padded once, outside the per-call forward.
    pad_f32 = pad_ann_params(params, dimensions, jnp.float32)
    pad_bf16 = pad_ann_params(params, dimensions, jnp.bfloat16)

    fused_f32 = jax.jit(partial(ann_forward, dimensions=dimensions))
    tiled_f32 = jax.jit(partial(ann_forward, dimensions=dimensions, force_tiled=True))
    fused_bf16 = jax.jit(
        partial(ann_forward, dimensions=dimensions, compute_dtype=jnp.bfloat16)
    )

    out_f = jax.block_until_ready(fused_f32(pad_f32, x))
    out_t = jax.block_until_ready(tiled_f32(pad_f32, x))
    out_b = jax.block_until_ready(fused_bf16(pad_bf16, x))

    assert out_f.shape == (batch, dimensions[-1])
    assert jnp.allclose(out_f, ref, atol=1e-5, rtol=1e-5), "fused f32 mismatch"
    assert jnp.allclose(out_t, ref, atol=1e-5, rtol=1e-5), "tiled f32 mismatch"
    assert jnp.allclose(out_b, ref, atol=5e-2, rtol=5e-2), "fused bf16 mismatch"

    # Multi-step batch grid (B > TB, not a multiple of 256): exercises the
    # pipelined fused path with resident weights.
    xb = jax.random.normal(jax.random.PRNGKey(1), (272, dimensions[0]), jnp.float32)
    refb = ann_forward_ref(params, xb, dimensions)
    outb = jax.block_until_ready(fused_f32(pad_f32, xb))
    assert jnp.allclose(outb, refb, atol=1e-5, rtol=1e-5), "batch-grid mismatch"

    # Multi-K-step tiled fallback (exercises the accumulator kernel).
    dims2 = (640, 512, 384)
    key2, kx2 = jax.random.split(jax.random.PRNGKey(2))
    x2 = jax.random.normal(kx2, (16, dims2[0]), jnp.float32)
    params2 = init_ann_params(key2, dims2)
    pad2 = pad_ann_params(params2, dims2, jnp.float32)
    ref2 = ann_forward_ref(params2, x2, dims2)
    out2 = jax.block_until_ready(
        jax.jit(partial(ann_forward, dimensions=dims2, force_tiled=True))(pad2, x2)
    )
    assert jnp.allclose(out2, ref2, atol=1e-4, rtol=1e-4), "tiled multi-K mismatch"

    print("KERNEL_OK")
</pallas_src>

<mosaic_0001>
module attributes {stable_mosaic.version = 11 : i64} {
  func.func @_fused_mlp_kernel(%arg0: i32, %arg1: memref<8x128xf32, #tpu.memory_space<vmem>>, %arg2: memref<128x128xf32, #tpu.memory_space<vmem>>, %arg3: memref<1x128xf32, #tpu.memory_space<vmem>>, %arg4: memref<128x128xf32, #tpu.memory_space<vmem>>, %arg5: memref<1x128xf32, #tpu.memory_space<vmem>>, %arg6: memref<128x128xf32, #tpu.memory_space<vmem>>, %arg7: memref<1x128xf32, #tpu.memory_space<vmem>>, %arg8: memref<8x128xf32, #tpu.memory_space<vmem>>) attributes {dimension_semantics = [#tpu.dimension_semantics<parallel>], iteration_bounds = array<i64: 1>, scalar_prefetch = 0 : i64, scratch_operands = 0 : i64, tpu.core_type = #tpu.core_type<tc>, window_params = [{transform_indices = @transform_0, window_bounds = array<i64: 8, 128>}, {pipeline_mode = #tpu.pipeline_mode<synchronous>, transform_indices = @transform_1, window_bounds = array<i64: 128, 128>}, {pipeline_mode = #tpu.pipeline_mode<synchronous>, transform_indices = @transform_2, window_bounds = array<i64: 1, 128>}, {pipeline_mode = #tpu.pipeline_mode<synchronous>, transform_indices = @transform_3, window_bounds = array<i64: 128, 128>}, {pipeline_mode = #tpu.pipeline_mode<synchronous>, transform_indices = @transform_4, window_bounds = array<i64: 1, 128>}, {pipeline_mode = #tpu.pipeline_mode<synchronous>, transform_indices = @transform_5, window_bounds = array<i64: 128, 128>}, {pipeline_mode = #tpu.pipeline_mode<synchronous>, transform_indices = @transform_6, window_bounds = array<i64: 1, 128>}, {transform_indices = @transform_7, window_bounds = array<i64: 8, 128>}]} {
    %c0 = arith.constant 0 : index
    %c0_0 = arith.constant 0 : index
    %0 = vector.load %arg1[%c0, %c0_0] : memref<8x128xf32, #tpu.memory_space<vmem>>, vector<8x128xf32>
    %c0_1 = arith.constant 0 : index
    %c0_2 = arith.constant 0 : index
    %1 = vector.load %arg2[%c0_1, %c0_2] : memref<128x128xf32, #tpu.memory_space<vmem>>, vector<128x128xf32>
    %c0_3 = arith.constant 0 : index
    %c0_4 = arith.constant 0 : index
    %2 = vector.load %arg3[%c0_3, %c0_4] : memref<1x128xf32, #tpu.memory_space<vmem>>, vector<1x128xf32>
    %cst = arith.constant dense<0.000000e+00> : vector<8x128xf32>
    %3 = tpu.matmul %0, %1, %cst {dimension_numbers = #tpu.dot_dimension_numbers<[1], [0], [0], [1], [0, 0, 1, 1], [], []>} : vector<8x128xf32>, vector<128x128xf32>, vector<8x128xf32> -> vector<8x128xf32>
    %4 = vector.broadcast %2 : vector<1x128xf32> to vector<8x128xf32>
    %5 = arith.addf %3, %4 : vector<8x128xf32>
    %cst_5 = arith.constant 0.000000e+00 : f32
    %6 = vector.broadcast %cst_5 : f32 to vector<8x128xf32>
    %7 = arith.maximumf %5, %6 : vector<8x128xf32>
    %c0_6 = arith.constant 0 : index
    %c0_7 = arith.constant 0 : index
    %8 = vector.load %arg4[%c0_6, %c0_7] : memref<128x128xf32, #tpu.memory_space<vmem>>, vector<128x128xf32>
    %c0_8 = arith.constant 0 : index
    %c0_9 = arith.constant 0 : index
    %9 = vector.load %arg5[%c0_8, %c0_9] : memref<1x128xf32, #tpu.memory_space<vmem>>, vector<1x128xf32>
    %cst_10 = arith.constant dense<0.000000e+00> : vector<8x128xf32>
    %10 = tpu.matmul %7, %8, %cst_10 {dimension_numbers = #tpu.dot_dimension_numbers<[1], [0], [0], [1], [0, 0, 1, 1], [], []>} : vector<8x128xf32>, vector<128x128xf32>, vector<8x128xf32> -> vector<8x128xf32>
    %11 = vector.broadcast %9 : vector<1x128xf32> to vector<8x128xf32>
    %12 = arith.addf %10, %11 : vector<8x128xf32>
    %cst_11 = arith.constant 0.000000e+00 : f32
    %13 = vector.broadcast %cst_11 : f32 to vector<8x128xf32>
    %14 = arith.maximumf %12, %13 : vector<8x128xf32>
    %c0_12 = arith.constant 0 : index
    %c0_13 = arith.constant 0 : index
    %15 = vector.load %arg6[%c0_12, %c0_13] : memref<128x128xf32, #tpu.memory_space<vmem>>, vector<128x128xf32>
    %c0_14 = arith.constant 0 : index
    %c0_15 = arith.constant 0 : index
    %16 = vector.load %arg7[%c0_14, %c0_15] : memref<1x128xf32, #tpu.memory_space<vmem>>, vector<1x128xf32>
    %cst_16 = arith.constant dense<0.000000e+00> : vector<8x128xf32>
    %17 = tpu.matmul %14, %15, %cst_16 {dimension_numbers = #tpu.dot_dimension_numbers<[1], [0], [0], [1], [0, 0, 1, 1], [], []>} : vector<8x128xf32>, vector<128x128xf32>, vector<8x128xf32> -> vector<8x128xf32>
    %18 = vector.broadcast %16 : vector<1x128xf32> to vector<8x128xf32>
    %19 = arith.addf %17, %18 : vector<8x128xf32>
    %c0_17 = arith.constant 0 : index
    %c0_18 = arith.constant 0 : index
    %20 = vector.load %arg8[%c0_17, %c0_18] : memref<8x128xf32, #tpu.memory_space<vmem>>, vector<8x128xf32>
    tpu.vector_store %arg8[%c0_17, %c0_18], %19 {strides = array<i32>} : memref<8x128xf32, #tpu.memory_space<vmem>>, vector<8x128xf32>,
    return
  }
  func.func @transform_0(%arg0: i32) -> (i32, i32) {
    %c0_i32 = arith.constant 0 : i32
    %c0_i32_0 = arith.constant 0 : i32
    return %arg0, %c0_i32 : i32, i32
  }
  func.func @transform_1(%arg0: i32) -> (i32, i32) {
    %c0_i32 = arith.constant 0 : i32
    %c0_i32_0 = arith.constant 0 : i32
    %c0_i32_1 = arith.constant 0 : i32
    return %c0_i32, %c0_i32_0 : i32, i32
  }
  func.func @transform_2(%arg0: i32) -> (i32, i32) {
    %c0_i32 = arith.constant 0 : i32
    %c0_i32_0 = arith.constant 0 : i32
    %c0_i32_1 = arith.constant 0 : i32
    return %c0_i32, %c0_i32_0 : i32, i32
  }
  func.func @transform_3(%arg0: i32) -> (i32, i32) {
    %c0_i32 = arith.constant 0 : i32
    %c0_i32_0 = arith.constant 0 : i32
    %c0_i32_1 = arith.constant 0 : i32
    return %c0_i32, %c0_i32_0 : i32, i32
  }
  func.func @transform_4(%arg0: i32) -> (i32, i32) {
    %c0_i32 = arith.constant 0 : i32
    %c0_i32_0 = arith.constant 0 : i32
    %c0_i32_1 = arith.constant 0 : i32
    return %c0_i32, %c0_i32_0 : i32, i32
  }
  func.func @transform_5(%arg0: i32) -> (i32, i32) {
    %c0_i32 = arith.constant 0 : i32
    %c0_i32_0 = arith.constant 0 : i32
    %c0_i32_1 = arith.constant 0 : i32
    return %c0_i32, %c0_i32_0 : i32, i32
  }
  func.func @transform_6(%arg0: i32) -> (i32, i32) {
    %c0_i32 = arith.constant 0 : i32
    %c0_i32_0 = arith.constant 0 : i32
    %c0_i32_1 = arith.constant 0 : i32
    return %c0_i32, %c0_i32_0 : i32, i32
  }
  func.func @transform_7(%arg0: i32) -> (i32, i32) {
    %c0_i32 = arith.constant 0 : i32
    %c0_i32_0 = arith.constant 0 : i32
    return %arg0, %c0_i32 : i32, i32
  }
}

</mosaic_0001>

<llo_original>
// kernel: ann_forward.1
$region0: #{ann_forward.1}
  #allocation0 [shape = 'u32[]', space=smem, size = 0x4, offset = 0x4, fixed_abs, tag = 'smem constant byte address 0x4 - core index']
  #allocation1 [shape = 'u32[144,128]{1,0:T(1,128)}', space=vmem, size = 0x12000, scoped, tag = 'internal scratch']
  %s0 = inlined_call_operand.vmem [shape: f32[8,128], index: 0, kind: input, shape index: {}]
  %s1 = inlined_call_operand.hbm [shape: f32[128,128], index: 1, kind: input, shape index: {}]
  %s2 = inlined_call_operand.vmem [shape: f32[1,128], index: 2, kind: input, shape index: {}]
  %s3 = inlined_call_operand.hbm [shape: f32[128,128], index: 3, kind: input, shape index: {}]
  %s4 = inlined_call_operand.vmem [shape: f32[1,128], index: 4, kind: input, shape index: {}]
  %s5 = inlined_call_operand.hbm [shape: f32[128,128], index: 5, kind: input, shape index: {}]
  %s6 = inlined_call_operand.vmem [shape: f32[1,128], index: 6, kind: input, shape index: {}]
  %s7 = inlined_call_operand.hbm [shape: f32[8,128], index: 7, kind: output, shape index: {}]
  %s8 = sld [smem:[#allocation0]]
  $region50: #{ann_forward.1} parent=0
    _
  %s10 = ssub.s32 1, %s8
  %s11 = scalar_select 0, %s10, %s8
  $region1: #{ann_forward.1} parent=0
    #allocation2 [shape = 'u8[65536]{0}', space=vmem, size = 0x10000, scoped, tag = 'input window, operand 1, single buffered']
    #allocation3 [shape = 's32[1]{0}', space=sflag, size = 0x4, scoped, tag = 'scoped memory for ann_forward.1']
    #allocation4 [shape = 's32[1]{0}', space=sflag, size = 0x4, scoped, tag = 'scoped memory for ann_forward.1']
    #allocation5 [shape = 'u8[65536]{0}', space=vmem, size = 0x10000, scoped, tag = 'input window, operand 3, single buffered']
    #allocation6 [shape = 's32[1]{0}', space=sflag, size = 0x4, scoped, tag = 'scoped memory for ann_forward.1']
    #allocation7 [shape = 'u8[65536]{0}', space=vmem, size = 0x10000, scoped, tag = 'input window, operand 5, single buffered']
    #allocation8 [shape = 'u8[4096]{0}', space=vmem, size = 0x1000, scoped, tag = 'output window, operand 0, single buffered']
    %12 = vsyncpa [#allocation3], 0
    %13 = vsyncpa [#allocation6], 0
    %14 = vsyncpa [#allocation4], 0
    // Predicated region
    $region2: #{ann_forward.1} parent=1 // pred_check
      _
    $region3: #{ann_forward.1} parent=1 // pred_check_branch
      %16 = sbr.rel (0) target = $region5
    $region4: #{ann_forward.1} parent=1 // pred_region
      _
    $region5: #{ann_forward.1} parent=1 // pred_fallthru
      _
    // Predicated region
    $region6: #{ann_forward.1} parent=1 // pred_check
      _
    $region7: #{ann_forward.1} parent=1 // pred_check_branch
      %18 = sbr.rel (0) target = $region9
    $region8: #{ann_forward.1} parent=1 // pred_region
      %s20 = ssub.s32 2048, 2048
      %21 = vsyncadd [#allocation3], %s20
      %s22 = sshll.u32 [#allocation2], 4
      %s23 = int_to_ptr.vmem [resolvable:$true] %s22
      %28 = dma.hbm_to_vmem [thread:$0]  %s1, 2048, %s23, [#allocation3], 128, 128, 8
    $region9: #{ann_forward.1} parent=1 // pred_fallthru
      _
    // Predicated region
    $region10: #{ann_forward.1} parent=1 // pred_check
      _
    $region11: #{ann_forward.1} parent=1 // pred_check_branch
      %30 = sbr.rel (0) target = $region13
    $region12: #{ann_forward.1} parent=1 // pred_region
      _
    $region13: #{ann_forward.1} parent=1 // pred_fallthru
      _
    // Predicated region
    $region14: #{ann_forward.1} parent=1 // pred_check
      _
    $region15: #{ann_forward.1} parent=1 // pred_check_branch
      %32 = sbr.rel (0) target = $region17
    $region16: #{ann_forward.1} parent=1 // pred_region
      %s34 = ssub.s32 2048, 2048
      %35 = vsyncadd [#allocation6], %s34
      %s36 = sshll.u32 [#allocation5], 4
      %s37 = int_to_ptr.vmem [resolvable:$true] %s36
      %42 = dma.hbm_to_vmem [thread:$0]  %s3, 2048, %s37, [#allocation6], 128, 128, 8
    $region17: #{ann_forward.1} parent=1 // pred_fallthru
      _
    // Predicated region
    $region18: #{ann_forward.1} parent=1 // pred_check
      _
    $region19: #{ann_forward.1} parent=1 // pred_check_branch
      %44 = sbr.rel (0) target = $region21
    $region20: #{ann_forward.1} parent=1 // pred_region
      _
    $region21: #{ann_forward.1} parent=1 // pred_fallthru
      _
    // Predicated region
    $region22: #{ann_forward.1} parent=1 // pred_check
      _
    $region23: #{ann_forward.1} parent=1 // pred_check_branch
      %46 = sbr.rel (0) target = $region25
    $region24: #{ann_forward.1} parent=1 // pred_region
      %s48 = ssub.s32 2048, 2048
      %49 = vsyncadd [#allocation6], %s48
      %s50 = sshll.u32 [#allocation7], 4
      %s51 = int_to_ptr.vmem [resolvable:$true] %s50
      %56 = dma.hbm_to_vmem [thread:$0]  %s5, 2048, %s51, [#allocation6], 128, 128, 8
    $region25: #{ann_forward.1} parent=1 // pred_fallthru
      _
    // Predicated region
    $region26: #{ann_forward.1} parent=1 // pred_check
      _
    $region27: #{ann_forward.1} parent=1 // pred_check_branch
      %58 = sbr.rel (0) target = $region29
    $region28: #{ann_forward.1} parent=1 // pred_region
      _
    $region29: #{ann_forward.1} parent=1 // pred_fallthru
      _
    // Predicated region
    $region30: #{ann_forward.1} parent=1 // pred_check
      _
    $region31: #{ann_forward.1} parent=1 // pred_check_branch
      %60 = sbr.rel (0) target = $region33
    $region32: #{ann_forward.1} parent=1 // pred_region
      %61 = dma.done [#allocation3], 2048
    $region33: #{ann_forward.1} parent=1 // pred_fallthru
      _
    // Predicated region
    $region34: #{ann_forward.1} parent=1 // pred_check
      _
    $region35: #{ann_forward.1} parent=1 // pred_check_branch
      %63 = sbr.rel (0) target = $region37
    $region36: #{ann_forward.1} parent=1 // pred_region
      %64 = dma.done [#allocation6], 2048
    $region37: #{ann_forward.1} parent=1 // pred_fallthru
      _
    // Predicated region
    $region38: #{ann_forward.1} parent=1 // pred_check
      _
    $region39: #{ann_forward.1} parent=1 // pred_check_branch
      %66 = sbr.rel (0) target = $region41
    $region40: #{ann_forward.1} parent=1 // pred_region
      %67 = dma.done [#allocation6], 2048
    $region41: #{ann_forward.1} parent=1 // pred_fallthru
      _
    %v68 = vld [vmem:[%s0] sm:$0xff]
    %v69 = vld [vmem:[#allocation2] sm:$0xff]
    %v70 = vld [vmem:[#allocation2 + $0x8] sm:$0xff]
    %v71 = vld [vmem:[#allocation2 + $0x10] sm:$0xff]
    %v72 = vld [vmem:[#allocation2 + $0x18] sm:$0xff]
    %v73 = vld [vmem:[#allocation2 + $0x20] sm:$0xff]
    %v74 = vld [vmem:[#allocation2 + $0x28] sm:$0xff]
    %v75 = vld [vmem:[#allocation2 + $0x30] sm:$0xff]
    %v76 = vld [vmem:[#allocation2 + $0x38] sm:$0xff]
    %v77 = vld [vmem:[#allocation2 + $0x40] sm:$0xff]
    %v78 = vld [vmem:[#allocation2 + $0x48] sm:$0xff]
    %v79 = vld [vmem:[#allocation2 + $0x50] sm:$0xff]
    %v80 = vld [vmem:[#allocation2 + $0x58] sm:$0xff]
    %v81 = vld [vmem:[#allocation2 + $0x60] sm:$0xff]
    %v82 = vld [vmem:[#allocation2 + $0x68] sm:$0xff]
    %v83 = vld [vmem:[#allocation2 + $0x70] sm:$0xff]
    %v84 = vld [vmem:[#allocation2 + $0x78] sm:$0xff]
    %v85 = vld [vmem:[%s2] sm:$0x1]
    %v87 = vlaneseq
    %v88 = vshrl.u32 %v87, 7
    %v89 = vsub.s32 0, %v88
    %v90 = vrot.slane %v85, %v89
    %92 = vmatprep.subr.mxu0 0.0
    %93 = vmatpush1.msra.mxu0 %v69
    %94 = vmatprep.subr.mxu0 0.0
    %95 = vmatpush1.msra.mxu0 %v70
    %96 = vmatprep.subr.mxu0 0.0
    %97 = vmatpush1.msra.mxu0 %v71
    %98 = vmatprep.subr.mxu0 0.0
    %99 = vmatpush1.msra.mxu0 %v72
    %100 = vmatprep.subr.mxu0 0.0
    %101 = vmatpush1.msra.mxu0 %v73
    %102 = vmatprep.subr.mxu0 0.0
    %103 = vmatpush1.msra.mxu0 %v74
    %104 = vmatprep.subr.mxu0 0.0
    %105 = vmatpush1.msra.mxu0 %v75
    %106 = vmatprep.subr.mxu0 0.0
    %107 = vmatpush1.msra.mxu0 %v76
    %108 = vmatprep.subr.mxu0 0.0
    %109 = vmatpush1.msra.mxu0 %v77
    %110 = vmatprep.subr.mxu0 0.0
    %111 = vmatpush1.msra.mxu0 %v78
    %112 = vmatprep.subr.mxu0 0.0
    %113 = vmatpush1.msra.mxu0 %v79
    %114 = vmatprep.subr.mxu0 0.0
    %115 = vmatpush1.msra.mxu0 %v80
    %116 = vmatprep.subr.mxu0 0.0
    %117 = vmatpush1.msra.mxu0 %v81
    %118 = vmatprep.subr.mxu0 0.0
    %119 = vmatpush1.msra.mxu0 %v82
    %120 = vmatprep.subr.mxu0 0.0
    %121 = vmatpush1.msra.mxu0 %v83
    %122 = vmatprep.subr.mxu0 0.0
    %123 = vmatpush1.msra.mxu0 %v84
    %124 = vmatprep.subr.mxu0 0.0
    %125 = vmatpush1.msra.mxu0 0.0
    %126 = vmatprep.subr.mxu0 0.0
    %127 = vmatpush1.msra.mxu0 0.0
    %128 = vmatprep.subr.mxu0 0.0
    %129 = vmatpush1.msra.mxu0 0.0
    %130 = vmatprep.subr.mxu0 0.0
    %131 = vmatpush1.msra.mxu0 0.0
    %132 = vmatprep.subr.mxu0 0.0
    %133 = vmatpush1.msra.mxu0 0.0
    %134 = vmatprep.subr.mxu0 0.0
    %135 = vmatpush1.msra.mxu0 0.0
    %136 = vmatprep.subr.mxu0 0.0
    %137 = vmatpush1.msra.mxu0 0.0
    %138 = vmatprep.subr.mxu0 0.0
    %139 = vmatpush1.msra.mxu0 0.0
    %140 = vmatprep.subr.mxu0 0.0
    %141 = vmatpush1.msra.mxu0 0.0
    %142 = vmatprep.subr.mxu0 0.0
    %143 = vmatpush1.msra.mxu0 0.0
    %144 = vmatprep.subr.mxu0 0.0
    %145 = vmatpush1.msra.mxu0 0.0
    %146 = vmatprep.subr.mxu0 0.0
    %147 = vmatpush1.msra.mxu0 0.0
    %148 = vmatprep.subr.mxu0 0.0
    %149 = vmatpush1.msra.mxu0 0.0
    %150 = vmatprep.subr.mxu0 0.0
    %151 = vmatpush1.msra.mxu0 0.0
    %152 = vmatprep.subr.mxu0 0.0
    %153 = vmatpush1.msra.mxu0 0.0
    %154 = vmatprep.subr.mxu0 0.0
    %155 = vmatpush1.msra.mxu0 0.0
    %156 = vmatprep.mubr.f32.mxu0 0.0
    %157 = vmatmul.mubr.f32.gmra.mrb[0].mxu0 %v68
    %v158 = vpop.f32.mrb[0].mxu0
    %v159 = vadd.f32 %v90, %v158
    %v160 = vpop.f32.mrb[0].mxu0
    %161 = vdwg.mxu0
    %v162 = vmax.f32 %v159, 0.0
    %v163 = vld [vmem:[#allocation5] sm:$0xff]
    %v164 = vld [vmem:[#allocation5 + $0x8] sm:$0xff]
    %v165 = vld [vmem:[#allocation5 + $0x10] sm:$0xff]
    %v166 = vld [vmem:[#allocation5 + $0x18] sm:$0xff]
    %v167 = vld [vmem:[#allocation5 + $0x20] sm:$0xff]
    %v168 = vld [vmem:[#allocation5 + $0x28] sm:$0xff]
    %v169 = vld [vmem:[#allocation5 + $0x30] sm:$0xff]
    %v170 = vld [vmem:[#allocation5 + $0x38] sm:$0xff]
    %v171 = vld [vmem:[#allocation5 + $0x40] sm:$0xff]
    %v172 = vld [vmem:[#allocation5 + $0x48] sm:$0xff]
    %v173 = vld [vmem:[#allocation5 + $0x50] sm:$0xff]
    %v174 = vld [vmem:[#allocation5 + $0x58] sm:$0xff]
    %v175 = vld [vmem:[#allocation5 + $0x60] sm:$0xff]
    %v176 = vld [vmem:[#allocation5 + $0x68] sm:$0xff]
    %v177 = vld [vmem:[#allocation5 + $0x70] sm:$0xff]
    %v178 = vld [vmem:[#allocation5 + $0x78] sm:$0xff]
    %v179 = vld [vmem:[%s4] sm:$0x1]
    %v181 = vlaneseq
    %v182 = vshrl.u32 %v181, 7
    %v183 = vsub.s32 0, %v182
    %v184 = vrot.slane %v179, %v183
    %186 = vmatprep.subr.mxu0 0.0
    %187 = vmatpush1.msra.mxu0 %v163
    %188 = vmatprep.subr.mxu0 0.0
    %189 = vmatpush1.msra.mxu0 %v164
    %190 = vmatprep.subr.mxu0 0.0
    %191 = vmatpush1.msra.mxu0 %v165
    %192 = vmatprep.subr.mxu0 0.0
    %193 = vmatpush1.msra.mxu0 %v166
    %194 = vmatprep.subr.mxu0 0.0
    %195 = vmatpush1.msra.mxu0 %v167
    %196 = vmatprep.subr.mxu0 0.0
    %197 = vmatpush1.msra.mxu0 %v168
    %198 = vmatprep.subr.mxu0 0.0
    %199 = vmatpush1.msra.mxu0 %v169
    %200 = vmatprep.subr.mxu0 0.0
    %201 = vmatpush1.msra.mxu0 %v170
    %202 = vmatprep.subr.mxu0 0.0
    %203 = vmatpush1.msra.mxu0 %v171
    %204 = vmatprep.subr.mxu0 0.0
    %205 = vmatpush1.msra.mxu0 %v172
    %206 = vmatprep.subr.mxu0 0.0
    %207 = vmatpush1.msra.mxu0 %v173
    %208 = vmatprep.subr.mxu0 0.0
    %209 = vmatpush1.msra.mxu0 %v174
    %210 = vmatprep.subr.mxu0 0.0
    %211 = vmatpush1.msra.mxu0 %v175
    %212 = vmatprep.subr.mxu0 0.0
    %213 = vmatpush1.msra.mxu0 %v176
    %214 = vmatprep.subr.mxu0 0.0
    %215 = vmatpush1.msra.mxu0 %v177
    %216 = vmatprep.subr.mxu0 0.0
    %217 = vmatpush1.msra.mxu0 %v178
    %218 = vmatprep.subr.mxu0 0.0
    %219 = vmatpush1.msra.mxu0 0.0
    %220 = vmatprep.subr.mxu0 0.0
    %221 = vmatpush1.msra.mxu0 0.0
    %222 = vmatprep.subr.mxu0 0.0
    %223 = vmatpush1.msra.mxu0 0.0
    %224 = vmatprep.subr.mxu0 0.0
    %225 = vmatpush1.msra.mxu0 0.0
    %226 = vmatprep.subr.mxu0 0.0
    %227 = vmatpush1.msra.mxu0 0.0
    %228 = vmatprep.subr.mxu0 0.0
    %229 = vmatpush1.msra.mxu0 0.0
    %230 = vmatprep.subr.mxu0 0.0
    %231 = vmatpush1.msra.mxu0 0.0
    %232 = vmatprep.subr.mxu0 0.0
    %233 = vmatpush1.msra.mxu0 0.0
    %234 = vmatprep.subr.mxu0 0.0
    %235 = vmatpush1.msra.mxu0 0.0
    %236 = vmatprep.subr.mxu0 0.0
    %237 = vmatpush1.msra.mxu0 0.0
    %238 = vmatprep.subr.mxu0 0.0
    %239 = vmatpush1.msra.mxu0 0.0
    %240 = vmatprep.subr.mxu0 0.0
    %241 = vmatpush1.msra.mxu0 0.0
    %242 = vmatprep.subr.mxu0 0.0
    %243 = vmatpush1.msra.mxu0 0.0
    %244 = vmatprep.subr.mxu0 0.0
    %245 = vmatpush1.msra.mxu0 0.0
    %246 = vmatprep.subr.mxu0 0.0
    %247 = vmatpush1.msra.mxu0 0.0
    %248 = vmatprep.subr.mxu0 0.0
    %249 = vmatpush1.msra.mxu0 0.0
    %250 = vmatprep.mubr.f32.mxu0 0.0
    %251 = vmatmul.mubr.f32.gmra.mrb[0].mxu0 %v162
    %v252 = vpop.f32.mrb[0].mxu0
    %v253 = vadd.f32 %v184, %v252
    %v254 = vpop.f32.mrb[0].mxu0
    %255 = vdwg.mxu0
    %v256 = vmax.f32 %v253, 0.0
    %v257 = vld [vmem:[#allocation7] sm:$0xff]
    %v258 = vld [vmem:[#allocation7 + $0x8] sm:$0xff]
    %v259 = vld [vmem:[#allocation7 + $0x10] sm:$0xff]
    %v260 = vld [vmem:[#allocation7 + $0x18] sm:$0xff]
    %v261 = vld [vmem:[#allocation7 + $0x20] sm:$0xff]
    %v262 = vld [vmem:[#allocation7 + $0x28] sm:$0xff]
    %v263 = vld [vmem:[#allocation7 + $0x30] sm:$0xff]
    %v264 = vld [vmem:[#allocation7 + $0x38] sm:$0xff]
    %v265 = vld [vmem:[#allocation7 + $0x40] sm:$0xff]
    %v266 = vld [vmem:[#allocation7 + $0x48] sm:$0xff]
    %v267 = vld [vmem:[#allocation7 + $0x50] sm:$0xff]
    %v268 = vld [vmem:[#allocation7 + $0x58] sm:$0xff]
    %v269 = vld [vmem:[#allocation7 + $0x60] sm:$0xff]
    %v270 = vld [vmem:[#allocation7 + $0x68] sm:$0xff]
    %v271 = vld [vmem:[#allocation7 + $0x70] sm:$0xff]
    %v272 = vld [vmem:[#allocation7 + $0x78] sm:$0xff]
    %v273 = vld [vmem:[%s6] sm:$0x1]
    %v275 = vlaneseq
    %v276 = vshrl.u32 %v275, 7
    %v277 = vsub.s32 0, %v276
    %v278 = vrot.slane %v273, %v277
    %280 = vmatprep.subr.mxu0 0.0
    %281 = vmatpush1.msra.mxu0 %v257
    %282 = vmatprep.subr.mxu0 0.0
    %283 = vmatpush1.msra.mxu0 %v258
    %284 = vmatprep.subr.mxu0 0.0
    %285 = vmatpush1.msra.mxu0 %v259
    %286 = vmatprep.subr.mxu0 0.0
    %287 = vmatpush1.msra.mxu0 %v260
    %288 = vmatprep.subr.mxu0 0.0
    %289 = vmatpush1.msra.mxu0 %v261
    %290 = vmatprep.subr.mxu0 0.0
    %291 = vmatpush1.msra.mxu0 %v262
    %292 = vmatprep.subr.mxu0 0.0
    %293 = vmatpush1.msra.mxu0 %v263
    %294 = vmatprep.subr.mxu0 0.0
    %295 = vmatpush1.msra.mxu0 %v264
    %296 = vmatprep.subr.mxu0 0.0
    %297 = vmatpush1.msra.mxu0 %v265
    %298 = vmatprep.subr.mxu0 0.0
    %299 = vmatpush1.msra.mxu0 %v266
    %300 = vmatprep.subr.mxu0 0.0
    %301 = vmatpush1.msra.mxu0 %v267
    %302 = vmatprep.subr.mxu0 0.0
    %303 = vmatpush1.msra.mxu0 %v268
    %304 = vmatprep.subr.mxu0 0.0
    %305 = vmatpush1.msra.mxu0 %v269
    %306 = vmatprep.subr.mxu0 0.0
    %307 = vmatpush1.msra.mxu0 %v270
    %308 = vmatprep.subr.mxu0 0.0
    %309 = vmatpush1.msra.mxu0 %v271
    %310 = vmatprep.subr.mxu0 0.0
    %311 = vmatpush1.msra.mxu0 %v272
    %312 = vmatprep.subr.mxu0 0.0
    %313 = vmatpush1.msra.mxu0 0.0
    %314 = vmatprep.subr.mxu0 0.0
    %315 = vmatpush1.msra.mxu0 0.0
    %316 = vmatprep.subr.mxu0 0.0
    %317 = vmatpush1.msra.mxu0 0.0
    %318 = vmatprep.subr.mxu0 0.0
    %319 = vmatpush1.msra.mxu0 0.0
    %320 = vmatprep.subr.mxu0 0.0
    %321 = vmatpush1.msra.mxu0 0.0
    %322 = vmatprep.subr.mxu0 0.0
    %323 = vmatpush1.msra.mxu0 0.0
    %324 = vmatprep.subr.mxu0 0.0
    %325 = vmatpush1.msra.mxu0 0.0
    %326 = vmatprep.subr.mxu0 0.0
    %327 = vmatpush1.msra.mxu0 0.0
    %328 = vmatprep.subr.mxu0 0.0
    %329 = vmatpush1.msra.mxu0 0.0
    %330 = vmatprep.subr.mxu0 0.0
    %331 = vmatpush1.msra.mxu0 0.0
    %332 = vmatprep.subr.mxu0 0.0
    %333 = vmatpush1.msra.mxu0 0.0
    %334 = vmatprep.subr.mxu0 0.0
    %335 = vmatpush1.msra.mxu0 0.0
    %336 = vmatprep.subr.mxu0 0.0
    %337 = vmatpush1.msra.mxu0 0.0
    %338 = vmatprep.subr.mxu0 0.0
    %339 = vmatpush1.msra.mxu0 0.0
    %340 = vmatprep.subr.mxu0 0.0
    %341 = vmatpush1.msra.mxu0 0.0
    %342 = vmatprep.subr.mxu0 0.0
    %343 = vmatpush1.msra.mxu0 0.0
    %344 = vmatprep.mubr.f32.mxu0 0.0
    %345 = vmatmul.mubr.f32.gmra.mrb[0].mxu0 %v256
    %v346 = vpop.f32.mrb[0].mxu0
    %v347 = vadd.f32 %v278, %v346
    %v348 = vpop.f32.mrb[0].mxu0
    %349 = vdwg.mxu0
    %350 = vst [vmem:[#allocation8] sm:$0xff] %v347
    // Predicated region
    $region42: #{ann_forward.1} parent=1 // pred_check
      _
    $region43: #{ann_forward.1} parent=1 // pred_check_branch
      %352 = sbr.rel (0) target = $region45
    $region44: #{ann_forward.1} parent=1 // pred_region
      %s354 = ssub.s32 128, 128
      %355 = vsyncadd [#allocation4], %s354
      %s357 = sshll.u32 [#allocation8], 4
      %s358 = int_to_ptr.vmem [resolvable:$true] %s357
      %360 = dma.vmem_to_hbm [thread:$0]  %s358, 128, %s7, [#allocation4]
    $region45: #{ann_forward.1} parent=1 // pred_fallthru
      _
    // Predicated region
    $region46: #{ann_forward.1} parent=1 // pred_check
      _
    $region47: #{ann_forward.1} parent=1 // pred_check_branch
      %362 = sbr.rel (0) target = $region49
    $region48: #{ann_forward.1} parent=1 // pred_region
      %363 = dma.done [#allocation4], 128
    $region49: #{ann_forward.1} parent=1 // pred_fallthru
      _
    %364 = vsyncpa [#allocation3], 1
    %365 = vsyncpa [#allocation6], 1
    %366 = vsyncpa [#allocation4], 1

</llo_original>
